<compile_context>
chip_gen: v7x
topology: tpu7x:2x2x1
jax: 0.10.0
libtpu: 0.0.40
codegen_flags: <defaults>
</compile_context>

<pallas_src>
import functools

import jax
import jax.numpy as jnp
from jax.experimental import pallas as pl
from jax.experimental.pallas import tpu as pltpu


def _is_small_int_power(power: float) -> bool:
    return float(int(power)) == float(power) and 1 <= int(power) <= 8


def _apply_power(y: jax.Array, power: float) -> jax.Array:
    """Elementwise y**power; integer powers become chained VPU multiplies."""
    if power == 1.0:
        return y
    if _is_small_int_power(power):
        p = int(power)
        out = y
        for _ in range(p - 1):
            out = out * y
        return out
    # Fractional / unusual exponent: EUP exp/log path (same semantics as reference).
    return y ** jnp.asarray(power, dtype=y.dtype)


def _triangle_kernel(x_ref, o_ref, *, power: float, inv_c: float):
    # x_ref block shape: (NB, C, TILE_HW) -- full channel extent is in the block.
    x = x_ref[...]
    # Channel mean: accumulate in f32 for accuracy, then drop back to input dtype
    # so the subtract / ReLU / power stay in the (possibly bf16) compute dtype.
    mean = (
        jnp.sum(x.astype(jnp.float32), axis=1, keepdims=True) * jnp.float32(inv_c)
    ).astype(x.dtype)
    y = jnp.maximum(x - mean, jnp.zeros((), x.dtype))  # ReLU
    y = _apply_power(y, power)
    o_ref[...] = y.astype(o_ref.dtype)


def triangle(x: jax.Array, power: float = 1.0) -> jax.Array:
    """Pallas implementation of Triangle.forward for NCHW input."""
    N, C, H, W = x.shape
    hw = H * W
    xr = x.reshape(N, C, hw)
    itemsize = jnp.dtype(x.dtype).itemsize

    # ~1 MiB per operand per block => (2 in + 2 out double-buffers) ~= 4 MiB VMEM,
    # safe on every generation (v5e 16 MiB scoped default, v7x 64 MiB physical).
    target_block_bytes = 1 << 20

    # Spatial tile: full extent if it fits, otherwise a lane-dense multiple of 128.
    max_tile_hw = max(128, (target_block_bytes // max(C * itemsize, 1)) // 128 * 128)
    if hw <= max_tile_hw:
        tile_hw = hw  # full extent (also covers hw not a multiple of 128)
    else:
        tile_hw = max_tile_hw

    # Pack batch elements per block when the per-batch slab is tiny (small C / hw),
    # so each grid step moves enough bytes to amortize the ~0.35us step overhead.
    if tile_hw == hw:
        nb = max(1, target_block_bytes // max(C * hw * itemsize, 1))
        nb = min(nb, N)
        while N % nb != 0:  # keep blocks exact along the batch axis
            nb -= 1
    else:
        nb = 1

    grid = (pl.cdiv(N, nb), pl.cdiv(hw, tile_hw))

    total = N * C * hw
    frac_power = (power != 1.0) and not _is_small_int_power(power)
    cost = pl.CostEstimate(
        flops=3 * total,
        transcendentals=(2 * total) if frac_power else 0,
        bytes_accessed=2 * total * itemsize,
    )

    out = pl.pallas_call(
        functools.partial(_triangle_kernel, power=power, inv_c=1.0 / C),
        out_shape=jax.ShapeDtypeStruct((N, C, hw), x.dtype),
        grid=grid,
        in_specs=[pl.BlockSpec((nb, C, tile_hw), lambda i, j: (i, 0, j))],
        out_specs=pl.BlockSpec((nb, C, tile_hw), lambda i, j: (i, 0, j)),
        compiler_params=pltpu.CompilerParams(
            dimension_semantics=("parallel", "parallel"),
        ),
        cost_estimate=cost,
    )(xr)
    return out.reshape(N, C, H, W)


def triangle_ref(x: jax.Array, power: float = 1.0) -> jax.Array:
    """Pure-JAX reference matching the PyTorch module."""
    xc = x - jnp.mean(x, axis=1, keepdims=True)
    return jnp.maximum(xc, 0.0) ** power


if __name__ == "__main__":
    key = jax.random.PRNGKey(0)
    # Small NCHW input consistent with the module's use on conv feature maps.
    x = jax.random.normal(key, (2, 4, 16, 16), dtype=jnp.float32)

    # power = 1 (module default)
    y1 = jax.block_until_ready(triangle(x, power=1.0))
    y1_ref = triangle_ref(x, power=1.0)
    assert y1.shape == x.shape and y1.dtype == x.dtype
    assert jnp.allclose(y1, y1_ref, atol=1e-5, rtol=1e-5)

    # power = 2 (integer-power fast path: VPU multiply instead of exp/log pow)
    y2 = jax.block_until_ready(triangle(x, power=2.0))
    y2_ref = triangle_ref(x, power=2.0)
    assert jnp.allclose(y2, y2_ref, atol=1e-5, rtol=1e-4)

    print("KERNEL_OK")
</pallas_src>

<mosaic_0001>
module attributes {stable_mosaic.version = 11 : i64} {
  func.func @_triangle_kernel(%arg0: i32, %arg1: i32, %arg2: memref<2x4x256xf32, #tpu.memory_space<vmem>>, %arg3: memref<2x4x256xf32, #tpu.memory_space<vmem>>) attributes {dimension_semantics = [#tpu.dimension_semantics<parallel>, #tpu.dimension_semantics<parallel>], iteration_bounds = array<i64: 1, 1>, scalar_prefetch = 0 : i64, scratch_operands = 0 : i64, tpu.core_type = #tpu.core_type<tc>, window_params = [{transform_indices = @transform_0, window_bounds = array<i64: 2, 4, 256>}, {transform_indices = @transform_1, window_bounds = array<i64: 2, 4, 256>}]} {
    %c0 = arith.constant 0 : index
    %c0_0 = arith.constant 0 : index
    %c0_1 = arith.constant 0 : index
    %0 = vector.load %arg2[%c0, %c0_0, %c0_1] : memref<2x4x256xf32, #tpu.memory_space<vmem>>, vector<2x4x256xf32>
    %cst = arith.constant dense<0.000000e+00> : vector<2x256xf32>
    %1 = vector.multi_reduction <add>, %0, %cst [1] : vector<2x4x256xf32> to vector<2x256xf32>
    %2 = vector.shape_cast %1 : vector<2x256xf32> to vector<2x1x256xf32>
    %cst_2 = arith.constant 2.500000e-01 : f32
    %3 = vector.broadcast %cst_2 : f32 to vector<2x1x256xf32>
    %4 = arith.mulf %2, %3 : vector<2x1x256xf32>
    %5 = vector.broadcast %4 : vector<2x1x256xf32> to vector<2x4x256xf32>
    %6 = arith.subf %0, %5 : vector<2x4x256xf32>
    %cst_3 = arith.constant 0.000000e+00 : f32
    %7 = vector.broadcast %cst_3 : f32 to vector<2x4x256xf32>
    %8 = arith.maximumf %6, %7 : vector<2x4x256xf32>
    %c0_4 = arith.constant 0 : index
    %c0_5 = arith.constant 0 : index
    %c0_6 = arith.constant 0 : index
    %9 = vector.load %arg3[%c0_4, %c0_5, %c0_6] : memref<2x4x256xf32, #tpu.memory_space<vmem>>, vector<2x4x256xf32>
    tpu.vector_store %arg3[%c0_4, %c0_5, %c0_6], %8 {strides = array<i32>} : memref<2x4x256xf32, #tpu.memory_space<vmem>>, vector<2x4x256xf32>,
    return
  }
  func.func @transform_0(%arg0: i32, %arg1: i32) -> (i32, i32, i32) {
    %c0_i32 = arith.constant 0 : i32
    %c0_i32_0 = arith.constant 0 : i32
    return %arg0, %c0_i32, %arg1 : i32, i32, i32
  }
  func.func @transform_1(%arg0: i32, %arg1: i32) -> (i32, i32, i32) {
    %c0_i32 = arith.constant 0 : i32
    %c0_i32_0 = arith.constant 0 : i32
    return %arg0, %c0_i32, %arg1 : i32, i32, i32
  }
}

</mosaic_0001>

<llo_original>
// kernel: tpu_custom_call.1
$region0: #{tpu_custom_call.1}
  #allocation0 [shape = 'u32[]', space=smem, size = 0x4, offset = 0x4, fixed_abs, tag = 'smem constant byte address 0x4 - core index']
  #allocation1 [shape = 'u32[144,128]{1,0:T(1,128)}', space=vmem, size = 0x12000, scoped, tag = 'internal scratch']
  %s0 = inlined_call_operand.hbm [shape: f32[2,4,256], index: 0, kind: input, shape index: {}]
  %s1 = inlined_call_operand.hbm [shape: f32[2,4,256], index: 1, kind: output, shape index: {}]
  %s2 = sld [smem:[#allocation0]]
  $region18: #{tpu_custom_call.1} parent=0
    _
  %s4 = ssub.s32 1, %s2
  %s5 = scalar_select 0, %s4, %s2
  $region1: #{tpu_custom_call.1} parent=0
    #allocation2 [shape = 'u8[8192]{0}', space=vmem, size = 0x2000, scoped, tag = 'input window, operand 0, single buffered']
    #allocation3 [shape = 's32[1]{0}', space=sflag, size = 0x4, scoped, tag = 'scoped memory for tpu_custom_call.1']
    #allocation4 [shape = 's32[1]{0}', space=sflag, size = 0x4, scoped, tag = 'scoped memory for tpu_custom_call.1']
    #allocation5 [shape = 'u8[8192]{0}', space=vmem, size = 0x2000, scoped, tag = 'output window, operand 0, single buffered']
    %6 = vsyncpa [#allocation3], 0
    %7 = vsyncpa [#allocation4], 0
    // Predicated region
    $region2: #{tpu_custom_call.1} parent=1 // pred_check
      _
    $region3: #{tpu_custom_call.1} parent=1 // pred_check_branch
      %9 = sbr.rel (0) target = $region5
    $region4: #{tpu_custom_call.1} parent=1 // pred_region
      %s11 = ssub.s32 256, 256
      %12 = vsyncadd [#allocation3], %s11
      %s13 = sshll.u32 [#allocation2], 4
      %s14 = int_to_ptr.vmem [resolvable:$true] %s13
      %19 = dma.hbm_to_vmem [thread:$0]  %s0, 256, %s14, [#allocation3], 128, 128, 8
    $region5: #{tpu_custom_call.1} parent=1 // pred_fallthru
      _
    // Predicated region
    $region6: #{tpu_custom_call.1} parent=1 // pred_check
      _
    $region7: #{tpu_custom_call.1} parent=1 // pred_check_branch
      %21 = sbr.rel (0) target = $region9
    $region8: #{tpu_custom_call.1} parent=1 // pred_region
      %22 = dma.done [#allocation3], 256
    $region9: #{tpu_custom_call.1} parent=1 // pred_fallthru
      _
    %v23 = vld [vmem:[#allocation2] sm:$0xff]
    %v24 = vld [vmem:[#allocation2 + $0x8] sm:$0xff]
    %v27 = vcombine.high %v23, %v23
    %v28 = vcombine.high %v24, %v24
    %vm31 = vcmask 1043456
    %v32 = vsel %vm31, %v23, 0.0
    %v33 = vrot.slane %v32, 4
    %v34 = vadd.f32 %v32, %v33
    %v35 = vrot.slane %v34, 2
    %v36 = vadd.f32 %v34, %v35
    %v37 = vrot.slane %v36, 1
    %v38 = vadd.f32 %v36, %v37
    %v39 = vsel %vm31, %v27, 0.0
    %v40 = vrot.slane %v39, 4
    %v41 = vadd.f32 %v39, %v40
    %v42 = vrot.slane %v41, 2
    %v43 = vadd.f32 %v41, %v42
    %v44 = vrot.slane %v43, 1
    %v45 = vadd.f32 %v43, %v44
    %v46 = vsel %vm31, %v24, 0.0
    %v47 = vrot.slane %v46, 4
    %v48 = vadd.f32 %v46, %v47
    %v49 = vrot.slane %v48, 2
    %v50 = vadd.f32 %v48, %v49
    %v51 = vrot.slane %v50, 1
    %v52 = vadd.f32 %v50, %v51
    %v53 = vsel %vm31, %v28, 0.0
    %v54 = vrot.slane %v53, 4
    %v55 = vadd.f32 %v53, %v54
    %v56 = vrot.slane %v55, 2
    %v57 = vadd.f32 %v55, %v56
    %v58 = vrot.slane %v57, 1
    %v59 = vadd.f32 %v57, %v58
    %v60 = vmul.f32 %v38, 0.25
    %v61 = vmul.f32 %v45, 0.25
    %v62 = vmul.f32 %v52, 0.25
    %v63 = vmul.f32 %v59, 0.25
    %v68 = vcombine.low %v60, %v61
    %v69 = vcombine.low %v62, %v63
    %v72 = vsub.f32 %v23, %v68
    %v73 = vsub.f32 %v24, %v69
    %v74 = vmax.f32 %v72, 0.0
    %v75 = vmax.f32 %v73, 0.0
    %76 = vst [vmem:[#allocation5] sm:$0xff] %v74
    %77 = vst [vmem:[#allocation5 + $0x8] sm:$0xff] %v75
    // Predicated region
    $region10: #{tpu_custom_call.1} parent=1 // pred_check
      _
    $region11: #{tpu_custom_call.1} parent=1 // pred_check_branch
      %79 = sbr.rel (0) target = $region13
    $region12: #{tpu_custom_call.1} parent=1 // pred_region
      %s81 = ssub.s32 256, 256
      %82 = vsyncadd [#allocation4], %s81
      %s83 = sshll.u32 [#allocation5], 4
      %s84 = int_to_ptr.vmem [resolvable:$true] %s83
      %89 = dma.vmem_to_hbm [thread:$0]  %s84, 256, %s1, [#allocation4], 128, 128, 8
    $region13: #{tpu_custom_call.1} parent=1 // pred_fallthru
      _
    // Predicated region
    $region14: #{tpu_custom_call.1} parent=1 // pred_check
      _
    $region15: #{tpu_custom_call.1} parent=1 // pred_check_branch
      %91 = sbr.rel (0) target = $region17
    $region16: #{tpu_custom_call.1} parent=1 // pred_region
      %92 = dma.done [#allocation4], 256
    $region17: #{tpu_custom_call.1} parent=1 // pred_fallthru
      _
    %93 = vsyncpa [#allocation3], 1
    %94 = vsyncpa [#allocation4], 1

</llo_original>
